<compile_context>
chip_gen: v6e
topology: v6e:2x2x1
jax: 0.10.0
libtpu: 0.0.40
codegen_flags: <defaults>
</compile_context>

<pallas_src>
import functools

import numpy as np
import jax
import jax.numpy as jnp
from jax.experimental import pallas as pl
from jax.experimental.pallas import tpu as pltpu


def _round_up(x, m):
    return (x + m - 1) // m * m


def _yolo_loss_kernel(pred_ref, target_ref, out_ref, *, grid_size, num_bboxes,
                      tile_n, n_valid):
    """One tile of cells: [TILE_N, D] pred/target blocks -> 5 partial sums."""
    inv_S = jnp.float32(1.0 / grid_size)
    class_start = num_bboxes * 5  # = 10 for B = 2

    # [TILE_N, D] tile straight from HBM -> channel-major [D, TILE_N], so every
    # per-channel quantity below is a lane-dense [1, TILE_N] row.
    pred = jnp.transpose(pred_ref[...].astype(jnp.float32))     # [D, TILE_N]
    target = jnp.transpose(target_ref[...].astype(jnp.float32))  # [D, TILE_N]

    # Shared squared-difference slab, computed once.
    diff = pred - target
    sq = diff * diff                                             # [D, TILE_N]

    # Validity of cells in this tile (the last tile of a large batch is partial
    # and its out-of-bounds lanes hold garbage that must not leak into sums).
    base = pl.program_id(0) * tile_n
    lane = jax.lax.broadcasted_iota(jnp.int32, (1, tile_n), 1)
    valid = (base + lane) < n_valid

    # Object / no-object masks come from target confidence of box 0 (row 4).
    t_conf0 = target[4:5, :]
    obj = (t_conf0 > 0.0) & valid
    noobj = (t_conf0 == 0.0) & valid

    # Hoisted single-row slices (each reused below; JAX won't CSE relayouts).
    p_x0, p_y0, p_w0, p_h0, p_c0 = (pred[0:1], pred[1:2], pred[2:3],
                                    pred[3:4], pred[4:5])
    p_x1, p_y1, p_w1, p_h1, p_c1 = (pred[5:6], pred[6:7], pred[7:8],
                                    pred[8:9], pred[9:10])
    t_x0, t_y0, t_w0, t_h0 = target[0:1], target[1:2], target[2:3], target[3:4]
    t_w1, t_h1 = target[7:8], target[8:9]
    sq_x0, sq_y0, sq_c0 = sq[0:1], sq[1:2], sq[4:5]
    sq_x1, sq_y1, sq_c1 = sq[5:6], sq[6:7], sq[9:10]

    # ---- responsible-box selection via IoU against target box 0 ----
    def to_xyxy(x, y, w, h):
        cx = x * inv_S
        cy = y * inv_S
        return cx - 0.5 * w, cy - 0.5 * h, cx + 0.5 * w, cy + 0.5 * h

    pb0 = to_xyxy(p_x0, p_y0, p_w0, p_h0)
    pb1 = to_xyxy(p_x1, p_y1, p_w1, p_h1)
    tb = to_xyxy(t_x0, t_y0, t_w0, t_h0)

    def iou(a, b):
        ax1, ay1, ax2, ay2 = a
        bx1, by1, bx2, by2 = b
        iw = jnp.maximum(jnp.minimum(ax2, bx2) - jnp.maximum(ax1, bx1), 0.0)
        ih = jnp.maximum(jnp.minimum(ay2, by2) - jnp.maximum(ay1, by1), 0.0)
        inter = iw * ih
        area_a = (ax2 - ax1) * (ay2 - ay1)
        area_b = (bx2 - bx1) * (by2 - by1)
        # eps keeps degenerate boxes from producing 0/0 NaN (the PyTorch
        # reference would NaN there); ~1e-7 relative deviation otherwise.
        denom = area_a + area_b - inter + jnp.float32(1e-9)
        r = pl.reciprocal(denom, approx=True)   # EUP slot
        r = r * (2.0 - denom * r)               # one Newton step -> ~f32 accuracy
        return inter * r

    iou0 = iou(pb0, tb)
    iou1 = iou(pb1, tb)
    resp1 = iou1 > iou0                         # box 1 responsible (ties -> box 0)
    max_iou = jnp.where(resp1, iou1, iou0)

    # ---- xy localization (pred/target share the responsible slot -> reuse sq) ----
    c_xy = jnp.where(obj, jnp.where(resp1, sq_x1 + sq_y1, sq_x0 + sq_y0), 0.0)

    # ---- wh localization in sqrt space: (sqrt(p)-sqrt(t))^2 = p + t - 2*sqrt(p*t)
    #      -> 2 sqrts/cell instead of 4. Non-object (and invalid) cells are forced
    #      to 1.0 so no NaN can leak into the sum. ----
    pw = jnp.where(obj, jnp.where(resp1, p_w1, p_w0), 1.0)
    ph = jnp.where(obj, jnp.where(resp1, p_h1, p_h0), 1.0)
    tw = jnp.where(obj, jnp.where(resp1, t_w1, t_w0), 1.0)
    th = jnp.where(obj, jnp.where(resp1, t_h1, t_h0), 1.0)
    # TODO(synk): clamp pw/ph/tw/th at 0 if the regression head is not sigmoided;
    # the PyTorch reference has the same sqrt(<0) NaN behaviour.
    dwh = (pw + tw - 2.0 * jnp.sqrt(pw * tw)) + (ph + th - 2.0 * jnp.sqrt(ph * th))
    c_wh = jnp.where(obj, dwh, 0.0)

    # ---- objectness: responsible predicted conf vs max IoU ----
    pconf = jnp.where(resp1, p_c1, p_c0)
    c_obj = jnp.where(obj, (pconf - max_iou) ** 2, 0.0)

    # ---- no-object confidence: conf slots of both boxes (rows 4 and 9) ----
    c_noobj = jnp.where(noobj, sq_c0 + sq_c1, 0.0)

    # ---- classification: rows class_start..D-1 via row mask + one sublane reduce ----
    row_ids = jax.lax.broadcasted_iota(jnp.int32, sq.shape, 0)
    class_sq = jnp.where(row_ids >= class_start, sq, 0.0)
    c_class = jnp.where(obj, jnp.sum(class_sq, axis=0, keepdims=True), 0.0)

    # ---- per-tile partial sums -> rows 0..4 of an (8,128)-aligned output block ----
    s_xy = jnp.sum(c_xy)
    s_wh = jnp.sum(c_wh)
    s_obj = jnp.sum(c_obj)
    s_noobj = jnp.sum(c_noobj)
    s_class = jnp.sum(c_class)

    row = jax.lax.broadcasted_iota(jnp.int32, (8, 128), 0)
    block = jnp.where(row == 0, s_xy, 0.0)
    block = jnp.where(row == 1, s_wh, block)
    block = jnp.where(row == 2, s_obj, block)
    block = jnp.where(row == 3, s_noobj, block)
    block = jnp.where(row == 4, s_class, block)
    out_ref[0] = block


def yolo_loss(pred, target, grid_size=7, num_bboxes=2, num_classes=20):
    """Returns (loss_xy, loss_wh, loss_obj, loss_noobj, loss_class)."""
    assert num_bboxes == 2, "kernel is specialized for the YOLOv1 default B=2"
    batch = pred.shape[0]
    d = num_bboxes * 5 + num_classes
    n_cells = int(np.prod(pred.shape[:-1]))  # batch * S * S

    # Natural [N, D] layout: a reshape only -- no standalone transpose kernel,
    # no extra HBM round-trip. The channel-major transpose happens per tile.
    pred2 = pred.reshape(n_cells, d)
    target2 = target.reshape(n_cells, d)

    max_tile = 4096  # (4096, 30) f32 block ~ 0.5 MiB -> double-buffered ~2 MiB
    if n_cells >= max_tile:
        tile_n = max_tile
        n_padded = n_cells               # partial last tile handled by masking
    else:
        # Small problems: zero-pad cells to a 128 multiple (cheap at small N)
        # so every vector op runs on full 128-lane vregs; padded cells have
        # target conf 0 and sq 0, so all five sums are unchanged.
        n_padded = _round_up(n_cells, 128)
        tile_n = n_padded
        if n_padded != n_cells:
            pad = ((0, n_padded - n_cells), (0, 0))
            pred2 = jnp.pad(pred2, pad)
            target2 = jnp.pad(target2, pad)

    num_tiles = pl.cdiv(n_padded, tile_n)

    kernel = functools.partial(
        _yolo_loss_kernel, grid_size=grid_size, num_bboxes=num_bboxes,
        tile_n=tile_n, n_valid=n_cells)

    cost = pl.CostEstimate(
        flops=int(80 * d * n_cells),
        transcendentals=int(4 * n_cells),
        bytes_accessed=int(2 * d * n_cells * pred2.dtype.itemsize
                           + num_tiles * 8 * 128 * 4))

    partials = pl.pallas_call(
        kernel,
        out_shape=jax.ShapeDtypeStruct((num_tiles, 8, 128), jnp.float32),
        grid=(num_tiles,),
        in_specs=[
            pl.BlockSpec((tile_n, d), lambda i: (i, 0)),
            pl.BlockSpec((tile_n, d), lambda i: (i, 0)),
        ],
        out_specs=pl.BlockSpec((1, 8, 128), lambda i: (i, 0, 0)),
        compiler_params=pltpu.CompilerParams(
            dimension_semantics=("parallel",)),
        cost_estimate=cost,
    )(pred2, target2)

    # Tiny final reduction outside the kernel: [num_tiles, 8, 128] -> [5].
    sums = partials.sum(axis=0)[:5, 0] / jnp.float32(batch)
    return sums[0], sums[1], sums[2], sums[3], sums[4]


def reference_loss(pred, target, S, B, C):
    """NumPy port of the original PyTorch forward (loops and all), for checking."""
    bs = float(pred.shape[0])
    obj = target[..., 4] > 0
    noobj = target[..., 4] == 0
    obj_pred = pred[obj].reshape(-1, B * 5 + C)
    obj_target = target[obj].reshape(-1, B * 5 + C)
    noobj_pred = pred[noobj].reshape(-1, B * 5 + C)
    noobj_target = target[noobj].reshape(-1, B * 5 + C)

    loss_noobj = np.sum(
        (noobj_pred[:, 4:B * 5:5] - noobj_target[:, 4:B * 5:5]) ** 2) / bs
    loss_class = np.sum((obj_pred[:, 5 * B:] - obj_target[:, 5 * B:]) ** 2) / bs

    op = obj_pred[:, :B * 5].reshape(-1, 5)
    ot = obj_target[:, :B * 5].reshape(-1, 5)
    resp = np.zeros(op.shape[0], dtype=bool)
    conf_t = np.zeros(op.shape[0], dtype=np.float64)

    def to_xyxy(b):
        return np.stack([b[:, 0] / S - 0.5 * b[:, 2],
                         b[:, 1] / S - 0.5 * b[:, 3],
                         b[:, 0] / S + 0.5 * b[:, 2],
                         b[:, 1] / S + 0.5 * b[:, 3]], axis=1)

    for i in range(0, op.shape[0], B):
        pc = to_xyxy(op[i:i + B])
        tc = to_xyxy(ot[i].reshape(1, 5))
        lt = np.maximum(pc[:, None, :2], tc[None, :, :2])
        rb = np.minimum(pc[:, None, 2:], tc[None, :, 2:])
        wh = np.clip(rb - lt, 0.0, None)
        inter = wh[..., 0] * wh[..., 1]
        a1 = (pc[:, 2] - pc[:, 0]) * (pc[:, 3] - pc[:, 1])
        a2 = (tc[:, 2] - tc[:, 0]) * (tc[:, 3] - tc[:, 1])
        iou = inter / (a1[:, None] + a2[None, :] - inter)
        idx = int(np.argmax(iou[:, 0]))
        resp[i + idx] = True
        conf_t[i + idx] = iou[idx, 0]

    pr = op[resp]
    tr = ot[resp]
    cr = conf_t[resp]
    loss_xy = np.sum((pr[:, :2] - tr[:, :2]) ** 2) / bs
    loss_wh = np.sum((np.sqrt(pr[:, 2:4]) - np.sqrt(tr[:, 2:4])) ** 2) / bs
    loss_obj = np.sum((pr[:, 4] - cr) ** 2) / bs
    return loss_xy, loss_wh, loss_obj, loss_noobj, loss_class


if __name__ == "__main__":
    batch, S, B, C = 2, 7, 2, 20
    D = B * 5 + C

    key = jax.random.PRNGKey(0)
    k1, k2, k3 = jax.random.split(key, 3)

    # Predictions: positive values so sqrt(w), sqrt(h) are defined (as in YOLO heads).
    pred = jax.random.uniform(k1, (batch, S, S, D), dtype=jnp.float32,
                              minval=0.01, maxval=1.0)
    # Targets: positive everywhere, then zero-out box-0 confidence for ~70% of cells
    # so we get a mix of object / no-object cells.
    target = jax.random.uniform(k2, (batch, S, S, D), dtype=jnp.float32,
                                minval=0.01, maxval=1.0)
    obj_cells = jax.random.bernoulli(k3, 0.3, (batch, S, S))
    target = target.at[..., 4].set(jnp.where(obj_cells, target[..., 4], 0.0))

    losses = yolo_loss(pred, target, grid_size=S, num_bboxes=B, num_classes=C)
    losses = jax.block_until_ready(losses)

    ref = reference_loss(np.asarray(pred, dtype=np.float64),
                         np.asarray(target, dtype=np.float64), float(S), B, C)
    names = ("loss_xy", "loss_wh", "loss_obj", "loss_noobj", "loss_class")
    for name, got, want in zip(names, losses, ref):
        got_f = float(got)
        want_f = float(want)
        assert abs(got_f - want_f) <= 1e-3 * max(1.0, abs(want_f)), (
            f"{name}: kernel={got_f} ref={want_f}")

    print("KERNEL_OK")
</pallas_src>

<mosaic_0001>
module attributes {stable_mosaic.version = 11 : i64} {
  func.func @_yolo_loss_kernel(%arg0: i32, %arg1: memref<128x30xf32, #tpu.memory_space<vmem>>, %arg2: memref<128x30xf32, #tpu.memory_space<vmem>>, %arg3: memref<1x8x128xf32, #tpu.memory_space<vmem>>) attributes {dimension_semantics = [#tpu.dimension_semantics<parallel>], iteration_bounds = array<i64: 1>, scalar_prefetch = 0 : i64, scratch_operands = 0 : i64, tpu.core_type = #tpu.core_type<tc>, window_params = [{transform_indices = @transform_0, window_bounds = array<i64: 128, 30>}, {transform_indices = @transform_1, window_bounds = array<i64: 128, 30>}, {transform_indices = @transform_2, window_bounds = array<i64: 1, 8, 128>}]} {
    %c0 = arith.constant 0 : index
    %c0_0 = arith.constant 0 : index
    %0 = vector.load %arg1[%c0, %c0_0] : memref<128x30xf32, #tpu.memory_space<vmem>>, vector<128x30xf32>
    %1 = tpu.transpose %0, [1, 0] : vector<128x30xf32> -> vector<30x128xf32>
    %c0_1 = arith.constant 0 : index
    %c0_2 = arith.constant 0 : index
    %2 = vector.load %arg2[%c0_1, %c0_2] : memref<128x30xf32, #tpu.memory_space<vmem>>, vector<128x30xf32>
    %3 = tpu.transpose %2, [1, 0] : vector<128x30xf32> -> vector<30x128xf32>
    %4 = arith.subf %1, %3 : vector<30x128xf32>
    %5 = arith.mulf %4, %4 : vector<30x128xf32>
    %c128_i32 = arith.constant 128 : i32
    %6 = arith.muli %arg0, %c128_i32 : i32
    %7 = tpu.iota {dimensions = array<i32: 1>} : vector<1x128xi32>
    %8 = vector.broadcast %6 : i32 to vector<1x128xi32>
    %9 = arith.addi %8, %7 : vector<1x128xi32>
    %c98_i32 = arith.constant 98 : i32
    %10 = vector.broadcast %c98_i32 : i32 to vector<1x128xi32>
    %11 = arith.cmpi slt, %9, %10 : vector<1x128xi32>
    %12 = vector.extract_strided_slice %3 {offsets = [4, 0], sizes = [1, 128], strides = [1, 1]} : vector<30x128xf32> to vector<1x128xf32>
    %cst = arith.constant 0.000000e+00 : f32
    %13 = vector.broadcast %cst : f32 to vector<1x128xf32>
    %14 = arith.cmpf ogt, %12, %13 : vector<1x128xf32>
    %15 = arith.andi %14, %11 : vector<1x128xi1>
    %cst_3 = arith.constant 0.000000e+00 : f32
    %16 = vector.broadcast %cst_3 : f32 to vector<1x128xf32>
    %17 = arith.cmpf oeq, %12, %16 : vector<1x128xf32>
    %18 = arith.andi %17, %11 : vector<1x128xi1>
    %19 = vector.extract_strided_slice %1 {offsets = [0, 0], sizes = [1, 128], strides = [1, 1]} : vector<30x128xf32> to vector<1x128xf32>
    %20 = vector.extract_strided_slice %1 {offsets = [1, 0], sizes = [1, 128], strides = [1, 1]} : vector<30x128xf32> to vector<1x128xf32>
    %21 = vector.extract_strided_slice %1 {offsets = [2, 0], sizes = [1, 128], strides = [1, 1]} : vector<30x128xf32> to vector<1x128xf32>
    %22 = vector.extract_strided_slice %1 {offsets = [3, 0], sizes = [1, 128], strides = [1, 1]} : vector<30x128xf32> to vector<1x128xf32>
    %23 = vector.extract_strided_slice %1 {offsets = [4, 0], sizes = [1, 128], strides = [1, 1]} : vector<30x128xf32> to vector<1x128xf32>
    %24 = vector.extract_strided_slice %1 {offsets = [5, 0], sizes = [1, 128], strides = [1, 1]} : vector<30x128xf32> to vector<1x128xf32>
    %25 = vector.extract_strided_slice %1 {offsets = [6, 0], sizes = [1, 128], strides = [1, 1]} : vector<30x128xf32> to vector<1x128xf32>
    %26 = vector.extract_strided_slice %1 {offsets = [7, 0], sizes = [1, 128], strides = [1, 1]} : vector<30x128xf32> to vector<1x128xf32>
    %27 = vector.extract_strided_slice %1 {offsets = [8, 0], sizes = [1, 128], strides = [1, 1]} : vector<30x128xf32> to vector<1x128xf32>
    %28 = vector.extract_strided_slice %1 {offsets = [9, 0], sizes = [1, 128], strides = [1, 1]} : vector<30x128xf32> to vector<1x128xf32>
    %29 = vector.extract_strided_slice %3 {offsets = [0, 0], sizes = [1, 128], strides = [1, 1]} : vector<30x128xf32> to vector<1x128xf32>
    %30 = vector.extract_strided_slice %3 {offsets = [1, 0], sizes = [1, 128], strides = [1, 1]} : vector<30x128xf32> to vector<1x128xf32>
    %31 = vector.extract_strided_slice %3 {offsets = [2, 0], sizes = [1, 128], strides = [1, 1]} : vector<30x128xf32> to vector<1x128xf32>
    %32 = vector.extract_strided_slice %3 {offsets = [3, 0], sizes = [1, 128], strides = [1, 1]} : vector<30x128xf32> to vector<1x128xf32>
    %33 = vector.extract_strided_slice %3 {offsets = [7, 0], sizes = [1, 128], strides = [1, 1]} : vector<30x128xf32> to vector<1x128xf32>
    %34 = vector.extract_strided_slice %3 {offsets = [8, 0], sizes = [1, 128], strides = [1, 1]} : vector<30x128xf32> to vector<1x128xf32>
    %35 = vector.extract_strided_slice %5 {offsets = [0, 0], sizes = [1, 128], strides = [1, 1]} : vector<30x128xf32> to vector<1x128xf32>
    %36 = vector.extract_strided_slice %5 {offsets = [1, 0], sizes = [1, 128], strides = [1, 1]} : vector<30x128xf32> to vector<1x128xf32>
    %37 = vector.extract_strided_slice %5 {offsets = [4, 0], sizes = [1, 128], strides = [1, 1]} : vector<30x128xf32> to vector<1x128xf32>
    %38 = vector.extract_strided_slice %5 {offsets = [5, 0], sizes = [1, 128], strides = [1, 1]} : vector<30x128xf32> to vector<1x128xf32>
    %39 = vector.extract_strided_slice %5 {offsets = [6, 0], sizes = [1, 128], strides = [1, 1]} : vector<30x128xf32> to vector<1x128xf32>
    %40 = vector.extract_strided_slice %5 {offsets = [9, 0], sizes = [1, 128], strides = [1, 1]} : vector<30x128xf32> to vector<1x128xf32>
    %cst_4 = arith.constant 0.142857149 : f32
    %41 = vector.broadcast %cst_4 : f32 to vector<1x128xf32>
    %42 = arith.mulf %19, %41 : vector<1x128xf32>
    %cst_5 = arith.constant 0.142857149 : f32
    %43 = vector.broadcast %cst_5 : f32 to vector<1x128xf32>
    %44 = arith.mulf %20, %43 : vector<1x128xf32>
    %cst_6 = arith.constant 5.000000e-01 : f32
    %45 = vector.broadcast %cst_6 : f32 to vector<1x128xf32>
    %46 = arith.mulf %45, %21 : vector<1x128xf32>
    %47 = arith.subf %42, %46 : vector<1x128xf32>
    %cst_7 = arith.constant 5.000000e-01 : f32
    %48 = vector.broadcast %cst_7 : f32 to vector<1x128xf32>
    %49 = arith.mulf %48, %22 : vector<1x128xf32>
    %50 = arith.subf %44, %49 : vector<1x128xf32>
    %cst_8 = arith.constant 5.000000e-01 : f32
    %51 = vector.broadcast %cst_8 : f32 to vector<1x128xf32>
    %52 = arith.mulf %51, %21 : vector<1x128xf32>
    %53 = arith.addf %42, %52 : vector<1x128xf32>
    %cst_9 = arith.constant 5.000000e-01 : f32
    %54 = vector.broadcast %cst_9 : f32 to vector<1x128xf32>
    %55 = arith.mulf %54, %22 : vector<1x128xf32>
    %56 = arith.addf %44, %55 : vector<1x128xf32>
    %cst_10 = arith.constant 0.142857149 : f32
    %57 = vector.broadcast %cst_10 : f32 to vector<1x128xf32>
    %58 = arith.mulf %24, %57 : vector<1x128xf32>
    %cst_11 = arith.constant 0.142857149 : f32
    %59 = vector.broadcast %cst_11 : f32 to vector<1x128xf32>
    %60 = arith.mulf %25, %59 : vector<1x128xf32>
    %cst_12 = arith.constant 5.000000e-01 : f32
    %61 = vector.broadcast %cst_12 : f32 to vector<1x128xf32>
    %62 = arith.mulf %61, %26 : vector<1x128xf32>
    %63 = arith.subf %58, %62 : vector<1x128xf32>
    %cst_13 = arith.constant 5.000000e-01 : f32
    %64 = vector.broadcast %cst_13 : f32 to vector<1x128xf32>
    %65 = arith.mulf %64, %27 : vector<1x128xf32>
    %66 = arith.subf %60, %65 : vector<1x128xf32>
    %cst_14 = arith.constant 5.000000e-01 : f32
    %67 = vector.broadcast %cst_14 : f32 to vector<1x128xf32>
    %68 = arith.mulf %67, %26 : vector<1x128xf32>
    %69 = arith.addf %58, %68 : vector<1x128xf32>
    %cst_15 = arith.constant 5.000000e-01 : f32
    %70 = vector.broadcast %cst_15 : f32 to vector<1x128xf32>
    %71 = arith.mulf %70, %27 : vector<1x128xf32>
    %72 = arith.addf %60, %71 : vector<1x128xf32>
    %cst_16 = arith.constant 0.142857149 : f32
    %73 = vector.broadcast %cst_16 : f32 to vector<1x128xf32>
    %74 = arith.mulf %29, %73 : vector<1x128xf32>
    %cst_17 = arith.constant 0.142857149 : f32
    %75 = vector.broadcast %cst_17 : f32 to vector<1x128xf32>
    %76 = arith.mulf %30, %75 : vector<1x128xf32>
    %cst_18 = arith.constant 5.000000e-01 : f32
    %77 = vector.broadcast %cst_18 : f32 to vector<1x128xf32>
    %78 = arith.mulf %77, %31 : vector<1x128xf32>
    %79 = arith.subf %74, %78 : vector<1x128xf32>
    %cst_19 = arith.constant 5.000000e-01 : f32
    %80 = vector.broadcast %cst_19 : f32 to vector<1x128xf32>
    %81 = arith.mulf %80, %32 : vector<1x128xf32>
    %82 = arith.subf %76, %81 : vector<1x128xf32>
    %cst_20 = arith.constant 5.000000e-01 : f32
    %83 = vector.broadcast %cst_20 : f32 to vector<1x128xf32>
    %84 = arith.mulf %83, %31 : vector<1x128xf32>
    %85 = arith.addf %74, %84 : vector<1x128xf32>
    %cst_21 = arith.constant 5.000000e-01 : f32
    %86 = vector.broadcast %cst_21 : f32 to vector<1x128xf32>
    %87 = arith.mulf %86, %32 : vector<1x128xf32>
    %88 = arith.addf %76, %87 : vector<1x128xf32>
    %89 = arith.minimumf %53, %85 : vector<1x128xf32>
    %90 = arith.maximumf %47, %79 : vector<1x128xf32>
    %91 = arith.subf %89, %90 : vector<1x128xf32>
    %cst_22 = arith.constant 0.000000e+00 : f32
    %92 = vector.broadcast %cst_22 : f32 to vector<1x128xf32>
    %93 = arith.maximumf %91, %92 : vector<1x128xf32>
    %94 = arith.minimumf %56, %88 : vector<1x128xf32>
    %95 = arith.maximumf %50, %82 : vector<1x128xf32>
    %96 = arith.subf %94, %95 : vector<1x128xf32>
    %cst_23 = arith.constant 0.000000e+00 : f32
    %97 = vector.broadcast %cst_23 : f32 to vector<1x128xf32>
    %98 = arith.maximumf %96, %97 : vector<1x128xf32>
    %99 = arith.mulf %93, %98 : vector<1x128xf32>
    %100 = arith.subf %53, %47 : vector<1x128xf32>
    %101 = arith.subf %56, %50 : vector<1x128xf32>
    %102 = arith.mulf %100, %101 : vector<1x128xf32>
    %103 = arith.subf %85, %79 : vector<1x128xf32>
    %104 = arith.subf %88, %82 : vector<1x128xf32>
    %105 = arith.mulf %103, %104 : vector<1x128xf32>
    %106 = arith.addf %102, %105 : vector<1x128xf32>
    %107 = arith.subf %106, %99 : vector<1x128xf32>
    %cst_24 = arith.constant 9.99999971E-10 : f32
    %108 = vector.broadcast %cst_24 : f32 to vector<1x128xf32>
    %109 = arith.addf %107, %108 : vector<1x128xf32>
    %110 = tpu.reciprocal %109 {approx = true} : vector<1x128xf32> -> vector<1x128xf32>
    %111 = arith.mulf %109, %110 : vector<1x128xf32>
    %cst_25 = arith.constant 2.000000e+00 : f32
    %112 = vector.broadcast %cst_25 : f32 to vector<1x128xf32>
    %113 = arith.subf %112, %111 : vector<1x128xf32>
    %114 = arith.mulf %110, %113 : vector<1x128xf32>
    %115 = arith.mulf %99, %114 : vector<1x128xf32>
    %116 = arith.minimumf %69, %85 : vector<1x128xf32>
    %117 = arith.maximumf %63, %79 : vector<1x128xf32>
    %118 = arith.subf %116, %117 : vector<1x128xf32>
    %cst_26 = arith.constant 0.000000e+00 : f32
    %119 = vector.broadcast %cst_26 : f32 to vector<1x128xf32>
    %120 = arith.maximumf %118, %119 : vector<1x128xf32>
    %121 = arith.minimumf %72, %88 : vector<1x128xf32>
    %122 = arith.maximumf %66, %82 : vector<1x128xf32>
    %123 = arith.subf %121, %122 : vector<1x128xf32>
    %cst_27 = arith.constant 0.000000e+00 : f32
    %124 = vector.broadcast %cst_27 : f32 to vector<1x128xf32>
    %125 = arith.maximumf %123, %124 : vector<1x128xf32>
    %126 = arith.mulf %120, %125 : vector<1x128xf32>
    %127 = arith.subf %69, %63 : vector<1x128xf32>
    %128 = arith.subf %72, %66 : vector<1x128xf32>
    %129 = arith.mulf %127, %128 : vector<1x128xf32>
    %130 = arith.subf %85, %79 : vector<1x128xf32>
    %131 = arith.subf %88, %82 : vector<1x128xf32>
    %132 = arith.mulf %130, %131 : vector<1x128xf32>
    %133 = arith.addf %129, %132 : vector<1x128xf32>
    %134 = arith.subf %133, %126 : vector<1x128xf32>
    %cst_28 = arith.constant 9.99999971E-10 : f32
    %135 = vector.broadcast %cst_28 : f32 to vector<1x128xf32>
    %136 = arith.addf %134, %135 : vector<1x128xf32>
    %137 = tpu.reciprocal %136 {approx = true} : vector<1x128xf32> -> vector<1x128xf32>
    %138 = arith.mulf %136, %137 : vector<1x128xf32>
    %cst_29 = arith.constant 2.000000e+00 : f32
    %139 = vector.broadcast %cst_29 : f32 to vector<1x128xf32>
    %140 = arith.subf %139, %138 : vector<1x128xf32>
    %141 = arith.mulf %137, %140 : vector<1x128xf32>
    %142 = arith.mulf %126, %141 : vector<1x128xf32>
    %143 = arith.cmpf ogt, %142, %115 : vector<1x128xf32>
    %144 = arith.select %143, %142, %115 : vector<1x128xi1>, vector<1x128xf32>
    %145 = arith.addf %38, %39 : vector<1x128xf32>
    %146 = arith.addf %35, %36 : vector<1x128xf32>
    %147 = arith.select %143, %145, %146 : vector<1x128xi1>, vector<1x128xf32>
    %cst_30 = arith.constant 0.000000e+00 : f32
    %148 = vector.broadcast %cst_30 : f32 to vector<1x128xf32>
    %149 = arith.select %15, %147, %148 : vector<1x128xi1>, vector<1x128xf32>
    %150 = arith.select %143, %26, %21 : vector<1x128xi1>, vector<1x128xf32>
    %cst_31 = arith.constant 1.000000e+00 : f32
    %151 = vector.broadcast %cst_31 : f32 to vector<1x128xf32>
    %152 = arith.select %15, %150, %151 : vector<1x128xi1>, vector<1x128xf32>
    %153 = arith.select %143, %27, %22 : vector<1x128xi1>, vector<1x128xf32>
    %cst_32 = arith.constant 1.000000e+00 : f32
    %154 = vector.broadcast %cst_32 : f32 to vector<1x128xf32>
    %155 = arith.select %15, %153, %154 : vector<1x128xi1>, vector<1x128xf32>
    %156 = arith.select %143, %33, %31 : vector<1x128xi1>, vector<1x128xf32>
    %cst_33 = arith.constant 1.000000e+00 : f32
    %157 = vector.broadcast %cst_33 : f32 to vector<1x128xf32>
    %158 = arith.select %15, %156, %157 : vector<1x128xi1>, vector<1x128xf32>
    %159 = arith.select %143, %34, %32 : vector<1x128xi1>, vector<1x128xf32>
    %cst_34 = arith.constant 1.000000e+00 : f32
    %160 = vector.broadcast %cst_34 : f32 to vector<1x128xf32>
    %161 = arith.select %15, %159, %160 : vector<1x128xi1>, vector<1x128xf32>
    %162 = arith.addf %152, %158 : vector<1x128xf32>
    %163 = arith.mulf %152, %158 : vector<1x128xf32>
    %164 = math.sqrt %163 : vector<1x128xf32>
    %cst_35 = arith.constant 2.000000e+00 : f32
    %165 = vector.broadcast %cst_35 : f32 to vector<1x128xf32>
    %166 = arith.mulf %165, %164 : vector<1x128xf32>
    %167 = arith.subf %162, %166 : vector<1x128xf32>
    %168 = arith.addf %155, %161 : vector<1x128xf32>
    %169 = arith.mulf %155, %161 : vector<1x128xf32>
    %170 = math.sqrt %169 : vector<1x128xf32>
    %cst_36 = arith.constant 2.000000e+00 : f32
    %171 = vector.broadcast %cst_36 : f32 to vector<1x128xf32>
    %172 = arith.mulf %171, %170 : vector<1x128xf32>
    %173 = arith.subf %168, %172 : vector<1x128xf32>
    %174 = arith.addf %167, %173 : vector<1x128xf32>
    %cst_37 = arith.constant 0.000000e+00 : f32
    %175 = vector.broadcast %cst_37 : f32 to vector<1x128xf32>
    %176 = arith.select %15, %174, %175 : vector<1x128xi1>, vector<1x128xf32>
    %177 = arith.select %143, %28, %23 : vector<1x128xi1>, vector<1x128xf32>
    %178 = arith.subf %177, %144 : vector<1x128xf32>
    %179 = arith.mulf %178, %178 : vector<1x128xf32>
    %cst_38 = arith.constant 0.000000e+00 : f32
    %180 = vector.broadcast %cst_38 : f32 to vector<1x128xf32>
    %181 = arith.select %15, %179, %180 : vector<1x128xi1>, vector<1x128xf32>
    %182 = arith.addf %37, %40 : vector<1x128xf32>
    %cst_39 = arith.constant 0.000000e+00 : f32
    %183 = vector.broadcast %cst_39 : f32 to vector<1x128xf32>
    %184 = arith.select %18, %182, %183 : vector<1x128xi1>, vector<1x128xf32>
    %185 = tpu.iota {dimensions = array<i32: 0>} : vector<30x128xi32>
    %c10_i32 = arith.constant 10 : i32
    %186 = vector.broadcast %c10_i32 : i32 to vector<30x128xi32>
    %187 = arith.cmpi sge, %185, %186 : vector<30x128xi32>
    %cst_40 = arith.constant 0.000000e+00 : f32
    %188 = vector.broadcast %cst_40 : f32 to vector<30x128xf32>
    %189 = arith.select %187, %5, %188 : vector<30x128xi1>, vector<30x128xf32>
    %cst_41 = arith.constant dense<0.000000e+00> : vector<128xf32>
    %190 = vector.multi_reduction <add>, %189, %cst_41 [0] : vector<30x128xf32> to vector<128xf32>
    %191 = vector.shape_cast %190 : vector<128xf32> to vector<1x128xf32>
    %cst_42 = arith.constant 0.000000e+00 : f32
    %192 = vector.broadcast %cst_42 : f32 to vector<1x128xf32>
    %193 = arith.select %15, %191, %192 : vector<1x128xi1>, vector<1x128xf32>
    %194 = vector.shape_cast %149 : vector<1x128xf32> to vector<1x1x128xf32>
    %cst_43 = arith.constant dense<0.000000e+00> : vector<1xf32>
    %195 = vector.multi_reduction <add>, %194, %cst_43 [1, 2] : vector<1x1x128xf32> to vector<1xf32>
    %196 = vector.shape_cast %195 : vector<1xf32> to vector<1x1x1xf32>
    %197 = vector.extract %196[0, 0, 0] : f32 from vector<1x1x1xf32>
    %198 = vector.shape_cast %176 : vector<1x128xf32> to vector<1x1x128xf32>
    %cst_44 = arith.constant dense<0.000000e+00> : vector<1xf32>
    %199 = vector.multi_reduction <add>, %198, %cst_44 [1, 2] : vector<1x1x128xf32> to vector<1xf32>
    %200 = vector.shape_cast %199 : vector<1xf32> to vector<1x1x1xf32>
    %201 = vector.extract %200[0, 0, 0] : f32 from vector<1x1x1xf32>
    %202 = vector.shape_cast %181 : vector<1x128xf32> to vector<1x1x128xf32>
    %cst_45 = arith.constant dense<0.000000e+00> : vector<1xf32>
    %203 = vector.multi_reduction <add>, %202, %cst_45 [1, 2] : vector<1x1x128xf32> to vector<1xf32>
    %204 = vector.shape_cast %203 : vector<1xf32> to vector<1x1x1xf32>
    %205 = vector.extract %204[0, 0, 0] : f32 from vector<1x1x1xf32>
    %206 = vector.shape_cast %184 : vector<1x128xf32> to vector<1x1x128xf32>
    %cst_46 = arith.constant dense<0.000000e+00> : vector<1xf32>
    %207 = vector.multi_reduction <add>, %206, %cst_46 [1, 2] : vector<1x1x128xf32> to vector<1xf32>
    %208 = vector.shape_cast %207 : vector<1xf32> to vector<1x1x1xf32>
    %209 = vector.extract %208[0, 0, 0] : f32 from vector<1x1x1xf32>
    %210 = vector.shape_cast %193 : vector<1x128xf32> to vector<1x1x128xf32>
    %cst_47 = arith.constant dense<0.000000e+00> : vector<1xf32>
    %211 = vector.multi_reduction <add>, %210, %cst_47 [1, 2] : vector<1x1x128xf32> to vector<1xf32>
    %212 = vector.shape_cast %211 : vector<1xf32> to vector<1x1x1xf32>
    %213 = vector.extract %212[0, 0, 0] : f32 from vector<1x1x1xf32>
    %214 = tpu.iota {dimensions = array<i32: 0>} : vector<8x128xi32>
    %c0_i32 = arith.constant 0 : i32
    %215 = vector.broadcast %c0_i32 : i32 to vector<8x128xi32>
    %216 = arith.cmpi eq, %214, %215 : vector<8x128xi32>
    %cst_48 = arith.constant 0.000000e+00 : f32
    %217 = vector.broadcast %197 : f32 to vector<8x128xf32>
    %218 = vector.broadcast %cst_48 : f32 to vector<8x128xf32>
    %219 = arith.select %216, %217, %218 : vector<8x128xi1>, vector<8x128xf32>
    %c1_i32 = arith.constant 1 : i32
    %220 = vector.broadcast %c1_i32 : i32 to vector<8x128xi32>
    %221 = arith.cmpi eq, %214, %220 : vector<8x128xi32>
    %222 = vector.broadcast %201 : f32 to vector<8x128xf32>
    %223 = arith.select %221, %222, %219 : vector<8x128xi1>, vector<8x128xf32>
    %c2_i32 = arith.constant 2 : i32
    %224 = vector.broadcast %c2_i32 : i32 to vector<8x128xi32>
    %225 = arith.cmpi eq, %214, %224 : vector<8x128xi32>
    %226 = vector.broadcast %205 : f32 to vector<8x128xf32>
    %227 = arith.select %225, %226, %223 : vector<8x128xi1>, vector<8x128xf32>
    %c3_i32 = arith.constant 3 : i32
    %228 = vector.broadcast %c3_i32 : i32 to vector<8x128xi32>
    %229 = arith.cmpi eq, %214, %228 : vector<8x128xi32>
    %230 = vector.broadcast %209 : f32 to vector<8x128xf32>
    %231 = arith.select %229, %230, %227 : vector<8x128xi1>, vector<8x128xf32>
    %c4_i32 = arith.constant 4 : i32
    %232 = vector.broadcast %c4_i32 : i32 to vector<8x128xi32>
    %233 = arith.cmpi eq, %214, %232 : vector<8x128xi32>
    %234 = vector.broadcast %213 : f32 to vector<8x128xf32>
    %235 = arith.select %233, %234, %231 : vector<8x128xi1>, vector<8x128xf32>
    %c0_49 = arith.constant 0 : index
    %c0_50 = arith.constant 0 : index
    %c0_51 = arith.constant 0 : index
    %236 = vector.load %arg3[%c0_49, %c0_50, %c0_51] : memref<1x8x128xf32, #tpu.memory_space<vmem>>, vector<1x8x128xf32>
    %237 = vector.shape_cast %236 : vector<1x8x128xf32> to vector<8x128xf32>
    %238 = vector.shape_cast %235 : vector<8x128xf32> to vector<1x8x128xf32>
    tpu.vector_store %arg3[%c0_49, %c0_50, %c0_51], %238 {strides = array<i32>} : memref<1x8x128xf32, #tpu.memory_space<vmem>>, vector<1x8x128xf32>,
    return
  }
  func.func @transform_0(%arg0: i32) -> (i32, i32) {
    %c0_i32 = arith.constant 0 : i32
    %c0_i32_0 = arith.constant 0 : i32
    return %arg0, %c0_i32 : i32, i32
  }
  func.func @transform_1(%arg0: i32) -> (i32, i32) {
    %c0_i32 = arith.constant 0 : i32
    %c0_i32_0 = arith.constant 0 : i32
    return %arg0, %c0_i32 : i32, i32
  }
  func.func @transform_2(%arg0: i32) -> (i32, i32, i32) {
    %c0_i32 = arith.constant 0 : i32
    %c0_i32_0 = arith.constant 0 : i32
    %c0_i32_1 = arith.constant 0 : i32
    return %arg0, %c0_i32, %c0_i32_0 : i32, i32, i32
  }
}

</mosaic_0001>

<llo_original>
// kernel: tpu_custom_call.1
$region0: #{tpu_custom_call.1}
  #allocation0 [shape = 'u32[]', space=smem, size = 0x4, offset = 0x4, fixed_abs, tag = 'smem constant byte address 0x4 - core index']
  #allocation1 [shape = 'u32[144,128]{1,0:T(1,128)}', space=vmem, size = 0x12000, scoped, tag = 'internal scratch']
  %s0 = inlined_call_operand.vmem [shape: f32[128,30], index: 0, kind: input, shape index: {}]
  %s1 = inlined_call_operand.vmem [shape: f32[128,30], index: 1, kind: input, shape index: {}]
  %s2 = inlined_call_operand.hbm [shape: f32[1,8,128], index: 2, kind: output, shape index: {}]
  %s3 = sld [smem:[#allocation0]]
  $region18: #{tpu_custom_call.1} parent=0
    _
  %s5 = ssub.s32 1, %s3
  %s6 = scalar_select 0, %s5, %s3
  $region1: #{tpu_custom_call.1} parent=0
    #allocation2 [shape = 'u8[4096]{0}', space=vmem, size = 0x1000, scoped, tag = 'output window, operand 0, single buffered']
    #allocation3 [shape = 's32[1]{0}', space=sflag, size = 0x4, scoped, tag = 'scoped memory for tpu_custom_call.1']
    %7 = vsyncpa [#allocation3], 0
    // Predicated region
    $region2: #{tpu_custom_call.1} parent=1 // pred_check
      _
    $region3: #{tpu_custom_call.1} parent=1 // pred_check_branch
      %9 = sbr.rel (0) target = $region5
    $region4: #{tpu_custom_call.1} parent=1 // pred_region
      _
    $region5: #{tpu_custom_call.1} parent=1 // pred_fallthru
      _
    // Predicated region
    $region6: #{tpu_custom_call.1} parent=1 // pred_check
      _
    $region7: #{tpu_custom_call.1} parent=1 // pred_check_branch
      %11 = sbr.rel (0) target = $region9
    $region8: #{tpu_custom_call.1} parent=1 // pred_region
      _
    $region9: #{tpu_custom_call.1} parent=1 // pred_fallthru
      _
    %v12 = vld [vmem:[%s0] sm:$0xff]
    %v13 = vld [vmem:[%s0 + $0x8] sm:$0xff]
    %v14 = vld [vmem:[%s0 + $0x10] sm:$0xff]
    %v15 = vld [vmem:[%s0 + $0x18] sm:$0xff]
    %v16 = vld [vmem:[%s0 + $0x20] sm:$0xff]
    %v17 = vld [vmem:[%s0 + $0x28] sm:$0xff]
    %v18 = vld [vmem:[%s0 + $0x30] sm:$0xff]
    %v19 = vld [vmem:[%s0 + $0x38] sm:$0xff]
    %v20 = vld [vmem:[%s0 + $0x40] sm:$0xff]
    %v21 = vld [vmem:[%s0 + $0x48] sm:$0xff]
    %v22 = vld [vmem:[%s0 + $0x50] sm:$0xff]
    %v23 = vld [vmem:[%s0 + $0x58] sm:$0xff]
    %v24 = vld [vmem:[%s0 + $0x60] sm:$0xff]
    %v25 = vld [vmem:[%s0 + $0x68] sm:$0xff]
    %v26 = vld [vmem:[%s0 + $0x70] sm:$0xff]
    %v27 = vld [vmem:[%s0 + $0x78] sm:$0xff]
    %28 = vxpose.xlu0.b32.start [1/16] %v12, 128
    %29 = vxpose.xlu0.b32.cont [2/16] %v13, 128
    %30 = vxpose.xlu0.b32.cont [3/16] %v14, 128
    %31 = vxpose.xlu0.b32.cont [4/16] %v15, 128
    %32 = vxpose.xlu0.b32.cont [5/16] %v16, 128
    %33 = vxpose.xlu0.b32.cont [6/16] %v17, 128
    %34 = vxpose.xlu0.b32.cont [7/16] %v18, 128
    %35 = vxpose.xlu0.b32.cont [8/16] %v19, 128
    %36 = vxpose.xlu0.b32.cont [9/16] %v20, 128
    %37 = vxpose.xlu0.b32.cont [10/16] %v21, 128
    %38 = vxpose.xlu0.b32.cont [11/16] %v22, 128
    %39 = vxpose.xlu0.b32.cont [12/16] %v23, 128
    %40 = vxpose.xlu0.b32.cont [13/16] %v24, 128
    %41 = vxpose.xlu0.b32.cont [14/16] %v25, 128
    %42 = vxpose.xlu0.b32.cont [15/16] %v26, 128
    %43 = vxpose.xlu0.b32.end [16/16] %v27, 128
    %v44 = vpop.trf.xlu0
    %v45 = vpop.trf.xlu0
    %v46 = vpop.trf.xlu0
    %v47 = vpop.trf.xlu0
    %v48 = vpop.trf.xlu0
    %v49 = vpop.trf.xlu0
    %v50 = vpop.trf.xlu0
    %v51 = vpop.trf.xlu0
    %v52 = vpop.trf.xlu0
    %v53 = vpop.trf.xlu0
    %v54 = vpop.trf.xlu0
    %v55 = vpop.trf.xlu0
    %v56 = vpop.trf.xlu0
    %v57 = vpop.trf.xlu0
    %v58 = vpop.trf.xlu0
    %v59 = vpop.trf.xlu0
    %v60 = vld [vmem:[%s1] sm:$0xff]
    %v61 = vld [vmem:[%s1 + $0x8] sm:$0xff]
    %v62 = vld [vmem:[%s1 + $0x10] sm:$0xff]
    %v63 = vld [vmem:[%s1 + $0x18] sm:$0xff]
    %v64 = vld [vmem:[%s1 + $0x20] sm:$0xff]
    %v65 = vld [vmem:[%s1 + $0x28] sm:$0xff]
    %v66 = vld [vmem:[%s1 + $0x30] sm:$0xff]
    %v67 = vld [vmem:[%s1 + $0x38] sm:$0xff]
    %v68 = vld [vmem:[%s1 + $0x40] sm:$0xff]
    %v69 = vld [vmem:[%s1 + $0x48] sm:$0xff]
    %v70 = vld [vmem:[%s1 + $0x50] sm:$0xff]
    %v71 = vld [vmem:[%s1 + $0x58] sm:$0xff]
    %v72 = vld [vmem:[%s1 + $0x60] sm:$0xff]
    %v73 = vld [vmem:[%s1 + $0x68] sm:$0xff]
    %v74 = vld [vmem:[%s1 + $0x70] sm:$0xff]
    %v75 = vld [vmem:[%s1 + $0x78] sm:$0xff]
    %76 = vxpose.xlu0.b32.start [1/16] %v60, 128
    %77 = vxpose.xlu0.b32.cont [2/16] %v61, 128
    %78 = vxpose.xlu0.b32.cont [3/16] %v62, 128
    %79 = vxpose.xlu0.b32.cont [4/16] %v63, 128
    %80 = vxpose.xlu0.b32.cont [5/16] %v64, 128
    %81 = vxpose.xlu0.b32.cont [6/16] %v65, 128
    %82 = vxpose.xlu0.b32.cont [7/16] %v66, 128
    %83 = vxpose.xlu0.b32.cont [8/16] %v67, 128
    %84 = vxpose.xlu0.b32.cont [9/16] %v68, 128
    %85 = vxpose.xlu0.b32.cont [10/16] %v69, 128
    %86 = vxpose.xlu0.b32.cont [11/16] %v70, 128
    %87 = vxpose.xlu0.b32.cont [12/16] %v71, 128
    %88 = vxpose.xlu0.b32.cont [13/16] %v72, 128
    %89 = vxpose.xlu0.b32.cont [14/16] %v73, 128
    %90 = vxpose.xlu0.b32.cont [15/16] %v74, 128
    %91 = vxpose.xlu0.b32.end [16/16] %v75, 128
    %v92 = vpop.trf.xlu0
    %v93 = vpop.trf.xlu0
    %v94 = vpop.trf.xlu0
    %v95 = vpop.trf.xlu0
    %v96 = vpop.trf.xlu0
    %v97 = vpop.trf.xlu0
    %v98 = vpop.trf.xlu0
    %v99 = vpop.trf.xlu0
    %v100 = vpop.trf.xlu0
    %v101 = vpop.trf.xlu0
    %v102 = vpop.trf.xlu0
    %v103 = vpop.trf.xlu0
    %v104 = vpop.trf.xlu0
    %v105 = vpop.trf.xlu0
    %v106 = vpop.trf.xlu0
    %v107 = vpop.trf.xlu0
    %v108 = vsub.f32 %v44, %v92
    %v109 = vsub.f32 %v45, %v93
    %v110 = vsub.f32 %v46, %v94
    %v111 = vsub.f32 %v47, %v95
    %v112 = vmul.f32 %v108, %v108
    %v113 = vmul.f32 %v109, %v109
    %v114 = vmul.f32 %v110, %v110
    %v115 = vmul.f32 %v111, %v111
    %s116 = smul.u32 0, 128
    %v117 = vlaneseq
    %v118 = vand.u32 %v117, 127
    %v119 = vstv %s116
    %v120 = vadd.s32 %v119, %v118
    %vm121 = vcmp.lt.s32.totalorder %v120, 98
    %vm122 = vcmp.gt.f32.partialorder %v92, 0.0
    %vm123 = vmand %vm122, %vm121
    %vm124 = vcmp.eq.f32.partialorder %v92, 0.0
    %vm125 = vmand %vm124, %vm121
    %v126 = vmul.f32 %v44, 0.14285715
    %v127 = vmul.f32 %v44, 0.5
    %v129 = vrot.slane %v127, 2
    %v131 = vsub.f32 %v126, %v129
    %v132 = vadd.f32 %v126, %v129
    %v133 = vmul.f32 %v45, 0.5
    %v135 = vrot.slane %v133, 2
    %v137 = vsub.f32 %v126, %v135
    %v138 = vadd.f32 %v126, %v135
    %v139 = vmul.f32 %v92, 0.14285715
    %v140 = vmul.f32 %v92, 0.5
    %v142 = vrot.slane %v140, 2
    %v144 = vsub.f32 %v139, %v142
    %v145 = vadd.f32 %v139, %v142
    %v146 = vmin.f32 %v132, %v145
    %v147 = vmax.f32 %v131, %v144
    %v148 = vsub.f32 %v146, %v147
    %v149 = vmax.f32 %v148, 0.0
    %v151 = vrot.slane %v149, 1
    %v153 = vmul.f32 %v149, %v151
    %v154 = vsub.f32 %v132, %v131
    %v156 = vrot.slane %v154, 1
    %v158 = vmul.f32 %v154, %v156
    %v159 = vsub.f32 %v145, %v144
    %v161 = vrot.slane %v159, 1
    %v163 = vmul.f32 %v159, %v161
    %v164 = vadd.f32 %v158, %v163
    %v165 = vsub.f32 %v164, %v153
    %v166 = vadd.f32 %v165, 1e-09
    %v167 = vrcp.pop %v166
    %v168 = vmul.f32 %v166, %v167
    %v169 = vsub.f32 2.0, %v168
    %v170 = vmul.f32 %v167, %v169
    %v171 = vmul.f32 %v153, %v170
    %v173 = vrot.slane %v145, 3
    %v175 = vmin.f32 %v132, %v173
    %v177 = vrot.slane %v144, 3
    %v179 = vmax.f32 %v131, %v177
    %v180 = vsub.f32 %v175, %v179
    %v181 = vmax.f32 %v180, 0.0
    %v182 = vmin.f32 %v138, %v173
    %v183 = vmax.f32 %v137, %v177
    %v184 = vsub.f32 %v182, %v183
    %v185 = vmax.f32 %v184, 0.0
    %v187 = vrot.slane %v185, 1
    %v189 = vmul.f32 %v181, %v187
    %v190 = vsub.f32 %v138, %v137
    %v192 = vrot.slane %v190, 1
    %v194 = vmul.f32 %v154, %v192
    %v196 = vrot.slane %v163, 3
    %v198 = vadd.f32 %v194, %v196
    %v199 = vsub.f32 %v198, %v189
    %v200 = vadd.f32 %v199, 1e-09
    %v201 = vrcp.pop %v200
    %v202 = vmul.f32 %v200, %v201
    %v203 = vsub.f32 2.0, %v202
    %v204 = vmul.f32 %v201, %v203
    %v205 = vmul.f32 %v189, %v204
    %v207 = vrot.slane %v171, 3
    %vm209 = vcmp.gt.f32.partialorder %v205, %v207
    %v210 = vsel %vm209, %v205, %v207
    %v212 = vrot.slane %v112, 1
    %v214 = vadd.f32 %v112, %v212
    %v216 = vrot.slane %v214, 3
    %v218 = vsel %vm209, %v214, %v216
    %v220 = vrot.slane %v218, 1
    %v222 = vsel %vm123, %v220, 0.0
    %v224 = vrot.slane %v44, 2
    %v226 = vrot.slane %v44, 5
    %v228 = vsel %vm209, %v224, %v226
    %v230 = vrot.slane %v228, 1
    %v232 = vsel %vm123, %v230, 1.0
    %v234 = vrot.slane %v45, 3
    %v236 = vrot.slane %v44, 6
    %v238 = vsel %vm209, %v234, %v236
    %v240 = vrot.slane %v238, 1
    %v242 = vsel %vm123, %v240, 1.0
    %v244 = vrot.slane %v92, 2
    %v246 = vrot.slane %v92, 5
    %v248 = vsel %vm209, %v244, %v246
    %v250 = vrot.slane %v248, 1
    %v252 = vsel %vm123, %v250, 1.0
    %v254 = vrot.slane %v93, 3
    %v256 = vrot.slane %v92, 6
    %v258 = vsel %vm209, %v254, %v256
    %v260 = vrot.slane %v258, 1
    %v262 = vsel %vm123, %v260, 1.0
    %v263 = vadd.f32 %v232, %v252
    %v264 = vmul.f32 %v232, %v252
    %v265 = vrsqrt.pop %v264
    %v266 = vmul.f32 %v264, %v265
    %vm267 = vcmp.eq.f32.partialorder %v264, inf
    %v268 = vsel %vm267, %v264, %v266
    %vm269 = vcmp.eq.f32.partialorder %v264, 0.0
    %v270 = vand.u32 %v264, 2147483648
    %v271 = vsel %vm269, %v270, %v268
    %v272 = vmul.f32 %v271, 2.0
    %v273 = vsub.f32 %v263, %v272
    %v274 = vadd.f32 %v242, %v262
    %v275 = vmul.f32 %v242, %v262
    %v276 = vrsqrt.pop %v275
    %v277 = vmul.f32 %v275, %v276
    %vm278 = vcmp.eq.f32.partialorder %v275, inf
    %v279 = vsel %vm278, %v275, %v277
    %vm280 = vcmp.eq.f32.partialorder %v275, 0.0
    %v281 = vand.u32 %v275, 2147483648
    %v282 = vsel %vm280, %v281, %v279
    %v283 = vmul.f32 %v282, 2.0
    %v284 = vsub.f32 %v274, %v283
    %v285 = vadd.f32 %v273, %v284
    %v286 = vsel %vm123, %v285, 0.0
    %v287 = vrot.slane %v45, 4
    %v289 = vrot.slane %v44, 7
    %v291 = vsel %vm209, %v287, %v289
    %v292 = vsub.f32 %v291, %v210
    %v293 = vmul.f32 %v292, %v292
    %v295 = vrot.slane %v293, 1
    %v297 = vsel %vm123, %v295, 0.0
    %v299 = vrot.slane %v113, 5
    %v301 = vadd.f32 %v112, %v299
    %v302 = vsel %vm125, %v301, 0.0
    %v303 = vlaneseq
    %v304 = vshrl.u32 %v303, 7
    %v305 = vadd.s32 %v304, 8
    %v306 = vadd.s32 %v304, 16
    %v307 = vadd.s32 %v304, 24
    %vm308 = vcmp.ge.s32.totalorder %v304, 10
    %vm309 = vcmp.ge.s32.totalorder %v305, 10
    %vm310 = vcmp.ge.s32.totalorder %v306, 10
    %vm311 = vcmp.ge.s32.totalorder %v307, 10
    %v312 = vsel %vm308, %v112, 0.0
    %v313 = vsel %vm309, %v113, 0.0
    %v314 = vsel %vm310, %v114, 0.0
    %v315 = vsel %vm311, %v115, 0.0
    %v316 = vadd.f32 %v312, %v313
    %v317 = vadd.f32 %v316, %v314
    %vm318 = vcmask 1045504
    %v319 = vsel %vm318, %v315, 0.0
    %v320 = vadd.f32 %v317, %v319
    %v321 = vrot.slane %v320, 4
    %v322 = vadd.f32 %v320, %v321
    %v323 = vrot.slane %v322, 2
    %v324 = vadd.f32 %v322, %v323
    %v325 = vrot.slane %v324, 1
    %v326 = vadd.f32 %v324, %v325
    %v327 = vsel %vm123, %v326, 0.0
    %v329 = vrot.slane %v222, 4
    %vm331 = vcmask 1040384
    %v332 = vsel %vm331, %v329, 0.0
    %333 = vadd.xlane.f32.xlu0 %v332
    %v334 = vpop.xlane.xlu0 %333
    %v335 = vrot.slane %v334, 4
    %v336 = vadd.f32 %v334, %v335
    %v337 = vrot.slane %v336, 2
    %v338 = vadd.f32 %v336, %v337
    %v339 = vrot.slane %v338, 1
    %v340 = vadd.f32 %v338, %v339
    %s341 = vtos %v340
    %v343 = vrot.slane %v286, 4
    %v345 = vsel %vm331, %v343, 0.0
    %346 = vadd.xlane.f32.xlu0 %v345
    %v347 = vpop.xlane.xlu0 %346
    %v348 = vrot.slane %v347, 4
    %v349 = vadd.f32 %v347, %v348
    %v350 = vrot.slane %v349, 2
    %v351 = vadd.f32 %v349, %v350
    %v352 = vrot.slane %v351, 1
    %v353 = vadd.f32 %v351, %v352
    %s354 = vtos %v353
    %v356 = vrot.slane %v297, 4
    %v358 = vsel %vm331, %v356, 0.0
    %359 = vadd.xlane.f32.xlu0 %v358
    %v360 = vpop.xlane.xlu0 %359
    %v361 = vrot.slane %v360, 4
    %v362 = vadd.f32 %v360, %v361
    %v363 = vrot.slane %v362, 2
    %v364 = vadd.f32 %v362, %v363
    %v365 = vrot.slane %v364, 1
    %v366 = vadd.f32 %v364, %v365
    %s367 = vtos %v366
    %v369 = vrot.slane %v302, 4
    %v371 = vsel %vm331, %v369, 0.0
    %372 = vadd.xlane.f32.xlu0 %v371
    %v373 = vpop.xlane.xlu0 %372
    %v374 = vrot.slane %v373, 4
    %v375 = vadd.f32 %v373, %v374
    %v376 = vrot.slane %v375, 2
    %v377 = vadd.f32 %v375, %v376
    %v378 = vrot.slane %v377, 1
    %v379 = vadd.f32 %v377, %v378
    %s380 = vtos %v379
    %v382 = vrot.slane %v327, 4
    %v384 = vsel %vm331, %v382, 0.0
    %385 = vadd.xlane.f32.xlu0 %v384
    %v386 = vpop.xlane.xlu0 %385
    %v387 = vrot.slane %v386, 4
    %v388 = vadd.f32 %v386, %v387
    %v389 = vrot.slane %v388, 2
    %v390 = vadd.f32 %v388, %v389
    %v391 = vrot.slane %v390, 1
    %v392 = vadd.f32 %v390, %v391
    %s393 = vtos %v392
    %vm394 = vcmp.eq.s32.totalorder %v304, 0
    %v395 = vstv %s341
    %v396 = vsel %vm394, %v395, 0.0
    %vm397 = vcmp.eq.s32.totalorder %v304, 1
    %v398 = vstv %s354
    %v399 = vsel %vm397, %v398, %v396
    %vm400 = vcmp.eq.s32.totalorder %v304, 2
    %v401 = vstv %s367
    %v402 = vsel %vm400, %v401, %v399
    %vm403 = vcmp.eq.s32.totalorder %v304, 3
    %v404 = vstv %s380
    %v405 = vsel %vm403, %v404, %v402
    %vm406 = vcmp.eq.s32.totalorder %v304, 4
    %v407 = vstv %s393
    %v408 = vsel %vm406, %v407, %v405
    %409 = vst [vmem:[#allocation2] sm:$0xff] %v408
    // Predicated region
    $region10: #{tpu_custom_call.1} parent=1 // pred_check
      _
    $region11: #{tpu_custom_call.1} parent=1 // pred_check_branch
      %411 = sbr.rel (0) target = $region13
    $region12: #{tpu_custom_call.1} parent=1 // pred_region
      %s413 = ssub.s32 128, 128
      %414 = vsyncadd [#allocation3], %s413
      %s416 = sshll.u32 [#allocation2], 4
      %s417 = int_to_ptr.vmem [resolvable:$true] %s416
      %419 = dma.vmem_to_hbm [thread:$0]  %s417, 128, %s2, [#allocation3]
    $region13: #{tpu_custom_call.1} parent=1 // pred_fallthru
      _
    // Predicated region
    $region14: #{tpu_custom_call.1} parent=1 // pred_check
      _
    $region15: #{tpu_custom_call.1} parent=1 // pred_check_branch
      %421 = sbr.rel (0) target = $region17
    $region16: #{tpu_custom_call.1} parent=1 // pred_region
      %422 = dma.done [#allocation3], 128
    $region17: #{tpu_custom_call.1} parent=1 // pred_fallthru
      _
    %423 = vsyncpa [#allocation3], 1

</llo_original>
